<compile_context>
chip_gen: v5e
topology: v5e:2x2
jax: 0.10.0
libtpu: 0.0.40
codegen_flags: <defaults>
</compile_context>

<pallas_src>
import functools

import jax
import jax.numpy as jnp
from jax.experimental import pallas as pl
from jax.experimental.pallas import tpu as pltpu


def _soft_ce_kernel(x_ref, t_ref, o_ref, *, hw, tile, need_mask):
    # x_ref, t_ref: (C, tile) tiles; softmax axis is axis 0 (sublanes).
    # o_ref: (1, tile) per-batch partial sums, resident across the pixel axis.
    i = pl.program_id(1)

    @pl.when(i == 0)
    def _():
        o_ref[...] = jnp.zeros_like(o_ref)

    x = x_ref[...].astype(jnp.float32)
    t = t_ref[...].astype(jnp.float32)

    # Numerically-stable log-sum-exp over the channel (sublane) axis.
    m = jnp.max(x, axis=0, keepdims=True)                              # (1, tile)
    lse = jnp.log(jnp.sum(jnp.exp(x - m), axis=0, keepdims=True)) + m  # (1, tile)

    # sum_c (lse - x) * t == lse * sum_c(t) - sum_c(x * t); never build nll.
    tsum = jnp.sum(t, axis=0, keepdims=True)                           # (1, tile)
    xt = jnp.sum(x * t, axis=0, keepdims=True)                         # (1, tile)
    partial = lse * tsum - xt                                          # (1, tile)

    if need_mask:
        # Ragged last tile: columns >= hw hold unspecified VMEM data; zero them.
        col = jax.lax.broadcasted_iota(jnp.int32, partial.shape, 1) + i * tile
        partial = jnp.where(col < hw, partial, 0.0)

    o_ref[...] += partial


def soft_cross_entropy_loss_2d(inputs, targets, *, tm=1024,
                               vmem_input_budget=8 * 1024 * 1024):
    """inputs, targets: (N, C, H, W). Returns a (1, 1, 1, 1) float32 loss."""
    N, C, H, W = inputs.shape
    assert targets.shape == inputs.shape, "kernel assumes targets share inputs' shape"
    HW = H * W

    # Free reshapes — no transpose, no extra HBM traffic.
    x = inputs.reshape(N, C, HW)
    t = targets.reshape(N, C, HW)

    # Pick the pixel tile: as large as requested, multiple of 128, and sized so
    # the double-buffered input blocks (2 inputs x 2 buffers) stay well under
    # the default scoped VMEM limit on every TPU generation (incl. v7x 64 MiB).
    itemsize = max(jnp.dtype(inputs.dtype).itemsize,
                   jnp.dtype(targets.dtype).itemsize)
    cap = max(128, (vmem_input_budget // (4 * C * itemsize)) // 128 * 128)
    tm_cap = min(max(128, (tm // 128) * 128), cap)

    if HW <= tm_cap:
        tile = HW          # full extent — always a legal last-dim block size
        n_tiles = 1
    else:
        tile = tm_cap      # multiple of 128
        n_tiles = pl.cdiv(HW, tile)
    need_mask = (n_tiles * tile) != HW

    kernel = functools.partial(_soft_ce_kernel, hw=HW, tile=tile,
                               need_mask=need_mask)

    partials = pl.pallas_call(
        kernel,
        out_shape=jax.ShapeDtypeStruct((N, 1, tile), jnp.float32),
        grid_spec=pltpu.PrefetchScalarGridSpec(
            num_scalar_prefetch=0,
            grid=(N, n_tiles),
            in_specs=[
                pl.BlockSpec((None, C, tile), lambda n, i: (n, 0, i)),
                pl.BlockSpec((None, C, tile), lambda n, i: (n, 0, i)),
            ],
            out_specs=pl.BlockSpec((None, 1, tile), lambda n, i: (n, 0, 0)),
        ),
        compiler_params=pltpu.CompilerParams(
            # Batch axis is independent per output block -> shardable across
            # TensorCores (v7x megacore); pixel axis is the reduction.
            dimension_semantics=("parallel", "arbitrary")),
    )(x, t)

    loss = jnp.sum(partials) / jnp.float32(H * W)
    return loss.reshape(1, 1, 1, 1)


if __name__ == "__main__":
    key = jax.random.PRNGKey(0)
    k1, k2, k3, k4 = jax.random.split(key, 4)

    # Primary small test: N=2, C=4, H=W=16 (single full-extent tile per batch).
    N, C, H, W = 2, 4, 16, 16
    inputs = jax.random.normal(k1, (N, C, H, W), dtype=jnp.float32)
    targets = jax.nn.softmax(
        jax.random.normal(k2, (N, C, H, W), dtype=jnp.float32), axis=1)

    out = jax.block_until_ready(soft_cross_entropy_loss_2d(inputs, targets))
    ref = jnp.sum(-jax.nn.log_softmax(inputs, axis=1) * targets) / (H * W)
    assert out.shape == (1, 1, 1, 1)
    assert jnp.allclose(out[0, 0, 0, 0], ref, rtol=1e-5, atol=1e-5), (out, ref)

    # Second test exercises the multi-tile path with a ragged (masked) tail:
    # HW = 18*18 = 324, tile forced to 128 -> 3 tiles, last one masked.
    N2, C2, H2, W2 = 2, 4, 18, 18
    inputs2 = jax.random.normal(k3, (N2, C2, H2, W2), dtype=jnp.float32)
    targets2 = jax.nn.softmax(
        jax.random.normal(k4, (N2, C2, H2, W2), dtype=jnp.float32), axis=1)

    out2 = jax.block_until_ready(
        soft_cross_entropy_loss_2d(inputs2, targets2, tm=128))
    ref2 = jnp.sum(-jax.nn.log_softmax(inputs2, axis=1) * targets2) / (H2 * W2)
    assert jnp.allclose(out2[0, 0, 0, 0], ref2, rtol=1e-5, atol=1e-5), (out2, ref2)

    print("KERNEL_OK")
</pallas_src>

<mosaic_0001>
module attributes {stable_mosaic.version = 11 : i64} {
  func.func @_soft_ce_kernel(%arg0: i32, %arg1: i32, %arg2: memref<1x4x256xf32, #tpu.memory_space<vmem>>, %arg3: memref<1x4x256xf32, #tpu.memory_space<vmem>>, %arg4: memref<1x1x256xf32, #tpu.memory_space<vmem>>) attributes {dimension_semantics = [#tpu.dimension_semantics<parallel>, #tpu.dimension_semantics<arbitrary>], iteration_bounds = array<i64: 2, 1>, scalar_prefetch = 0 : i64, scratch_operands = 0 : i64, tpu.core_type = #tpu.core_type<tc>, window_params = [{transform_indices = @transform_0, window_bounds = array<i64: 1, 4, 256>}, {transform_indices = @transform_1, window_bounds = array<i64: 1, 4, 256>}, {transform_indices = @transform_2, window_bounds = array<i64: 1, 1, 256>}]} {
    %c0_i32 = arith.constant 0 : i32
    %0 = arith.cmpi eq, %arg1, %c0_i32 : i32
    %1 = arith.extui %0 : i1 to i32
    %c0_i32_0 = arith.constant 0 : i32
    %2 = arith.cmpi ne, %1, %c0_i32_0 : i32
    scf.if %2 {
      %cst_15 = arith.constant 0.000000e+00 : f32
      %29 = vector.broadcast %cst_15 : f32 to vector<1x256xf32>
      %c0_16 = arith.constant 0 : index
      %c0_17 = arith.constant 0 : index
      %c0_18 = arith.constant 0 : index
      %30 = vector.load %arg4[%c0_16, %c0_17, %c0_18] : memref<1x1x256xf32, #tpu.memory_space<vmem>>, vector<1x1x256xf32>
      %31 = vector.shape_cast %30 : vector<1x1x256xf32> to vector<1x256xf32>
      %32 = vector.shape_cast %29 : vector<1x256xf32> to vector<1x1x256xf32>
      tpu.vector_store %arg4[%c0_16, %c0_17, %c0_18], %32 {strides = array<i32>} : memref<1x1x256xf32, #tpu.memory_space<vmem>>, vector<1x1x256xf32>,
    } else {
    }
    %c0 = arith.constant 0 : index
    %c0_1 = arith.constant 0 : index
    %c0_2 = arith.constant 0 : index
    %3 = vector.load %arg2[%c0, %c0_1, %c0_2] : memref<1x4x256xf32, #tpu.memory_space<vmem>>, vector<1x4x256xf32>
    %4 = vector.shape_cast %3 : vector<1x4x256xf32> to vector<4x256xf32>
    %c0_3 = arith.constant 0 : index
    %c0_4 = arith.constant 0 : index
    %c0_5 = arith.constant 0 : index
    %5 = vector.load %arg3[%c0_3, %c0_4, %c0_5] : memref<1x4x256xf32, #tpu.memory_space<vmem>>, vector<1x4x256xf32>
    %6 = vector.shape_cast %5 : vector<1x4x256xf32> to vector<4x256xf32>
    %cst = arith.constant dense<0xFF800000> : vector<256xf32>
    %7 = vector.multi_reduction <maximumf>, %4, %cst [0] : vector<4x256xf32> to vector<256xf32>
    %8 = vector.shape_cast %7 : vector<256xf32> to vector<1x256xf32>
    %9 = vector.broadcast %8 : vector<1x256xf32> to vector<4x256xf32>
    %10 = arith.subf %4, %9 : vector<4x256xf32>
    %11 = math.exp %10 : vector<4x256xf32>
    %cst_6 = arith.constant dense<0.000000e+00> : vector<256xf32>
    %12 = vector.multi_reduction <add>, %11, %cst_6 [0] : vector<4x256xf32> to vector<256xf32>
    %13 = vector.shape_cast %12 : vector<256xf32> to vector<1x256xf32>
    %14 = math.log %13 : vector<1x256xf32>
    %15 = arith.addf %14, %8 : vector<1x256xf32>
    %cst_7 = arith.constant dense<0.000000e+00> : vector<256xf32>
    %16 = vector.multi_reduction <add>, %6, %cst_7 [0] : vector<4x256xf32> to vector<256xf32>
    %17 = vector.shape_cast %16 : vector<256xf32> to vector<1x256xf32>
    %18 = arith.mulf %4, %6 : vector<4x256xf32>
    %cst_8 = arith.constant dense<0.000000e+00> : vector<256xf32>
    %19 = vector.multi_reduction <add>, %18, %cst_8 [0] : vector<4x256xf32> to vector<256xf32>
    %20 = vector.shape_cast %19 : vector<256xf32> to vector<1x256xf32>
    %21 = arith.mulf %15, %17 : vector<1x256xf32>
    %22 = arith.subf %21, %20 : vector<1x256xf32>
    %c0_9 = arith.constant 0 : index
    %c0_10 = arith.constant 0 : index
    %c0_11 = arith.constant 0 : index
    %23 = vector.load %arg4[%c0_9, %c0_10, %c0_11] : memref<1x1x256xf32, #tpu.memory_space<vmem>>, vector<1x1x256xf32>
    %24 = vector.shape_cast %23 : vector<1x1x256xf32> to vector<1x256xf32>
    %25 = arith.addf %24, %22 : vector<1x256xf32>
    %c0_12 = arith.constant 0 : index
    %c0_13 = arith.constant 0 : index
    %c0_14 = arith.constant 0 : index
    %26 = vector.load %arg4[%c0_12, %c0_13, %c0_14] : memref<1x1x256xf32, #tpu.memory_space<vmem>>, vector<1x1x256xf32>
    %27 = vector.shape_cast %26 : vector<1x1x256xf32> to vector<1x256xf32>
    %28 = vector.shape_cast %25 : vector<1x256xf32> to vector<1x1x256xf32>
    tpu.vector_store %arg4[%c0_12, %c0_13, %c0_14], %28 {strides = array<i32>} : memref<1x1x256xf32, #tpu.memory_space<vmem>>, vector<1x1x256xf32>,
    return
  }
  func.func @transform_0(%arg0: i32, %arg1: i32) -> (i32, i32, i32) {
    %c0_i32 = arith.constant 0 : i32
    %c0_i32_0 = arith.constant 0 : i32
    return %arg0, %c0_i32, %arg1 : i32, i32, i32
  }
  func.func @transform_1(%arg0: i32, %arg1: i32) -> (i32, i32, i32) {
    %c0_i32 = arith.constant 0 : i32
    %c0_i32_0 = arith.constant 0 : i32
    return %arg0, %c0_i32, %arg1 : i32, i32, i32
  }
  func.func @transform_2(%arg0: i32, %arg1: i32) -> (i32, i32, i32) {
    %c0_i32 = arith.constant 0 : i32
    %c0_i32_0 = arith.constant 0 : i32
    %c0_i32_1 = arith.constant 0 : i32
    return %arg0, %c0_i32, %c0_i32_0 : i32, i32, i32
  }
}

</mosaic_0001>

<llo_original>
// kernel: tpu_custom_call.1
$region0: #{tpu_custom_call.1}
  #allocation0 [shape = 'u32[]', space=smem, size = 0x4, offset = 0x4, fixed_abs, tag = 'smem constant byte address 0x4 - core index']
  #allocation1 [shape = 'u32[72,128]{1,0:T(1,128)}', space=vmem, size = 0x9000, scoped, tag = 'internal scratch']
  %s0 = inlined_call_operand.hbm [shape: f32[2,4,256], index: 0, kind: input, shape index: {}]
  %s1 = inlined_call_operand.hbm [shape: f32[2,4,256], index: 1, kind: input, shape index: {}]
  %s2 = inlined_call_operand.hbm [shape: f32[2,1,256], index: 2, kind: output, shape index: {}]
  %s3 = sld [smem:[#allocation0]]
  $region53: #{tpu_custom_call.1} parent=0
    _
  %s5 = ssub.s32 1, %s3
  %s6 = scalar_select 0, %s5, %s3
  $region1: #{tpu_custom_call.1} parent=0
    #allocation2 [shape = 'u8[8192]{0}', space=vmem, size = 0x2000, scoped, tag = 'input window, operand 0']
    #allocation3 [shape = 's32[2]{0}', space=sflag, size = 0x8, scoped, tag = 'scoped memory for tpu_custom_call.1']
    #allocation4 [shape = 's32[2]{0}', space=sflag, size = 0x8, scoped, tag = 'scoped memory for tpu_custom_call.1']
    #allocation5 [shape = 'u8[8192]{0}', space=vmem, size = 0x2000, scoped, tag = 'input window, operand 1']
    #allocation6 [shape = 's32[2]{0}', space=sflag, size = 0x8, scoped, tag = 'scoped memory for tpu_custom_call.1']
    #allocation7 [shape = 'u8[2048]{0}', space=vmem, size = 0x800, scoped, tag = 'output window, operand 0']
    %7 = vsyncpa [#allocation3], 0
    %s8 = scalar_lea.sflag [#allocation3], 1
    %9 = vsyncpa %s8, 0
    %10 = vsyncpa [#allocation6], 0
    %s11 = scalar_lea.sflag [#allocation6], 1
    %12 = vsyncpa %s11, 0
    %13 = vsyncpa [#allocation4], 0
    %s14 = scalar_lea.sflag [#allocation4], 1
    %15 = vsyncpa %s14, 0
    loop: start=0, step=1, limit=4
    $region2: #{tpu_custom_call.1} parent=1 // loop_pre_header
      _
    $region3: #{tpu_custom_call.1} parent=1 // loop_header
      %s17 = sphi 0, %s21
      %p18 = scmp.ge.s32.totalorder %s17, 4
      %s24 = sphi 0, %s36
      %s25 = sphi 0, %s32
      %s26 = sphi 0, %s24
      %s27 = sphi 0, %s25
      %s28 = sphi 0, %s26
      %s29 = sphi 0, %s27
      %s41 = sphi 0, %s43
      %s44 = sphi 0, %s41
      %s45 = sphi 0, %s44
      %s61 = sphi 0, %s45
      %s69 = sphi 0, %s71
      %s72 = sphi 0, %s69
      %s73 = sphi 0, %s72
      %s89 = sphi 0, %s73
      %s95 = sphi 0, %s97
      %s98 = sphi 0, %s95
      %s99 = sphi 0, %s98
      %s115 = sphi 0, %s99
    $region4: #{tpu_custom_call.1} parent=1 // loop_header_branch
      %20 = sbr.rel (%p18) target = $region8
    $region5: #{tpu_custom_call.1} parent=1 // loop_body
      %s22 = ssub.s32 %s17, 1
      %s23 = ssub.s32 %s17, 2
      %s30 = sadd.s32 1, %s25
      %p31 = scmp.ge.s32.totalorder %s30, 1
      %s32 = scalar_select %p31, 0, %s30
      %s33 = sadd.s32 1, %s24
      %s34 = scalar_select %p31, %s33, %s24
      %p35 = scmp.ge.s32.totalorder %s34, 2
      %s36 = scalar_select %p35, 0, %s34
      %s37 = ssub.s32 %s24, %s36
      %s38 = ssub.s32 %s25, %s32
      %s39 = sor.u32 %s37, %s38
      %p40 = scmp.eq.s32.totalorder %s39, 0
      %s42 = sadd.s32 %s41, 1
      %s43 = scalar_select %p40, %s41, %s42
      %p46 = pneg %p40
      %p47 = scmp.eq.s32.totalorder %s17, 1
      %p48 = por %p46, %p47
      %p49 = scmp.ne.s32.totalorder %s41, %s44
      %p50 = scmp.eq.s32.totalorder %s17, 0
      %p51 = por %p49, %p50
      %p52 = scmp.ne.s32.totalorder %s41, %s44
      %p53 = scmp.eq.s32.totalorder %s22, 1
      %p54 = por %p52, %p53
      %p55 = scmp.ne.s32.totalorder %s44, %s45
      %p56 = scmp.eq.s32.totalorder %s22, 0
      %p57 = por %p55, %p56
      %p58 = scmp.ne.s32.totalorder %s44, %s45
      %p59 = scmp.eq.s32.totalorder %s23, 1
      %p60 = por %p58, %p59
      %p62 = scmp.ne.s32.totalorder %s45, %s61
      %p63 = scmp.eq.s32.totalorder %s23, 0
      %p64 = por %p62, %p63
      %s65 = ssub.s32 %s24, %s36
      %s66 = ssub.s32 %s25, %s32
      %s67 = sor.u32 %s65, %s66
      %p68 = scmp.eq.s32.totalorder %s67, 0
      %s70 = sadd.s32 %s69, 1
      %s71 = scalar_select %p68, %s69, %s70
      %p74 = pneg %p68
      %p75 = scmp.eq.s32.totalorder %s17, 1
      %p76 = por %p74, %p75
      %p77 = scmp.ne.s32.totalorder %s69, %s72
      %p78 = scmp.eq.s32.totalorder %s17, 0
      %p79 = por %p77, %p78
      %p80 = scmp.ne.s32.totalorder %s69, %s72
      %p81 = scmp.eq.s32.totalorder %s22, 1
      %p82 = por %p80, %p81
      %p83 = scmp.ne.s32.totalorder %s72, %s73
      %p84 = scmp.eq.s32.totalorder %s22, 0
      %p85 = por %p83, %p84
      %p86 = scmp.ne.s32.totalorder %s72, %s73
      %p87 = scmp.eq.s32.totalorder %s23, 1
      %p88 = por %p86, %p87
      %p90 = scmp.ne.s32.totalorder %s73, %s89
      %p91 = scmp.eq.s32.totalorder %s23, 0
      %p92 = por %p90, %p91
      %s93 = ssub.s32 %s24, %s36
      %p94 = scmp.eq.s32.totalorder %s93, 0
      %s96 = sadd.s32 %s95, 1
      %s97 = scalar_select %p94, %s95, %s96
      %p100 = pneg %p94
      %p101 = scmp.eq.s32.totalorder %s17, 1
      %p102 = por %p100, %p101
      %p103 = scmp.ne.s32.totalorder %s95, %s98
      %p104 = scmp.eq.s32.totalorder %s17, 0
      %p105 = por %p103, %p104
      %p106 = scmp.ne.s32.totalorder %s95, %s98
      %p107 = scmp.eq.s32.totalorder %s22, 1
      %p108 = por %p106, %p107
      %p109 = scmp.ne.s32.totalorder %s98, %s99
      %p110 = scmp.eq.s32.totalorder %s22, 0
      %p111 = por %p109, %p110
      %p112 = scmp.ne.s32.totalorder %s98, %s99
      %p113 = scmp.eq.s32.totalorder %s23, 1
      %p114 = por %p112, %p113
      %p116 = scmp.ne.s32.totalorder %s99, %s115
      %p117 = scmp.eq.s32.totalorder %s23, 0
      %p118 = por %p116, %p117
      %p119 = scmp.le.s32.totalorder 1, %s17
      %p120 = scmp.lt.s32.totalorder %s17, 3
      %p121 = pnand %p119, %p120
      %p122 = pneg %p121
      // Predicated region
      $region9: #{tpu_custom_call.1} parent=5 // pred_check
        _
      $region10: #{tpu_custom_call.1} parent=5 // pred_check_branch
        %124 = sbr.rel (%p121) target = $region12
      $region11: #{tpu_custom_call.1} parent=5 // pred_region
        %s125 = ssub.s32 %s17, 1
      $region12: #{tpu_custom_call.1} parent=5 // pred_fallthru
        _
      %p126 = scmp.lt.s32.totalorder %s17, 2
      // Predicated region
      $region13: #{tpu_custom_call.1} parent=5 // pred_check
        %p127 = pneg %p126
      $region14: #{tpu_custom_call.1} parent=5 // pred_check_branch
        %129 = sbr.rel (%p127) target = $region16
      $region15: #{tpu_custom_call.1} parent=5 // pred_region
        // Predicated region
        $region17: #{tpu_custom_call.1} parent=15 // pred_check
          %p130 = pneg %p51
        $region18: #{tpu_custom_call.1} parent=15 // pred_check_branch
          %132 = sbr.rel (%p130) target = $region20
        $region19: #{tpu_custom_call.1} parent=15 // pred_region
          %s133 = sand.u32 %s41, 1
          %s134 = scalar_lea.sflag [#allocation3], %s133
          %s135 = sand.u32 %s41, 1
          %s136 = smul.addr %s135, 8
          %s137 = scalar_lea.vmem [#allocation2], %s136
          %s138 = smul.u32 2, %s25
          %140 = vsyncadd %s134, 0
          %s141 = smul.addr %s24, 2
          %s142 = sadd.s32 %s138, %s141
          %s143 = smul.addr %s142, 4
          %s144 = scalar_lea.hbm %s0, %s143
          %s146 = sshll.u32 %s144, 4
          %s147 = int_to_ptr.hbm [resolvable:$true] %s146
          %s148 = sshll.u32 %s137, 4
          %s149 = int_to_ptr.vmem [resolvable:$true] %s148
          %151 = dma.hbm_to_vmem [thread:$0]  %s147, 128, %s149, %s134
        $region20: #{tpu_custom_call.1} parent=15 // pred_fallthru
          _
        // Predicated region
        $region21: #{tpu_custom_call.1} parent=15 // pred_check
          %p152 = pneg %p79
        $region22: #{tpu_custom_call.1} parent=15 // pred_check_branch
          %154 = sbr.rel (%p152) target = $region24
        $region23: #{tpu_custom_call.1} parent=15 // pred_region
          %s155 = sand.u32 %s69, 1
          %s156 = scalar_lea.sflag [#allocation6], %s155
          %s157 = sand.u32 %s69, 1
          %s158 = smul.addr %s157, 8
          %s159 = scalar_lea.vmem [#allocation5], %s158
          %s160 = smul.u32 2, %s25
          %162 = vsyncadd %s156, 0
          %s163 = smul.addr %s24, 2
          %s164 = sadd.s32 %s160, %s163
          %s165 = smul.addr %s164, 4
          %s166 = scalar_lea.hbm %s1, %s165
          %s168 = sshll.u32 %s166, 4
          %s169 = int_to_ptr.hbm [resolvable:$true] %s168
          %s170 = sshll.u32 %s159, 4
          %s171 = int_to_ptr.vmem [resolvable:$true] %s170
          %173 = dma.hbm_to_vmem [thread:$0]  %s169, 128, %s171, %s156
        $region24: #{tpu_custom_call.1} parent=15 // pred_fallthru
          _
      $region16: #{tpu_custom_call.1} parent=5 // pred_fallthru
        _
      %p174 = scmp.le.s32.totalorder 1, %s17
      %p175 = scmp.lt.s32.totalorder %s17, 3
      %p176 = pnand %p174, %p175
      %p177 = pneg %p176
      // Predicated region
      $region25: #{tpu_custom_call.1} parent=5 // pred_check
        _
      $region26: #{tpu_custom_call.1} parent=5 // pred_check_branch
        %179 = sbr.rel (%p176) target = $region28
      $region27: #{tpu_custom_call.1} parent=5 // pred_region
        %s180 = ssub.s32 %s17, 1
        %s181 = sand.u32 %s44, 1
        %s182 = scalar_lea.sflag [#allocation3], %s181
        %s183 = sand.u32 %s44, 1
        %s184 = smul.addr %s183, 8
        %s185 = scalar_lea.vmem [#allocation2], %s184
        // Predicated region
        $region29: #{tpu_custom_call.1} parent=27 // pred_check
          %p186 = pneg %p57
        $region30: #{tpu_custom_call.1} parent=27 // pred_check_branch
          %188 = sbr.rel (%p186) target = $region32
        $region31: #{tpu_custom_call.1} parent=27 // pred_region
          %190 = dma.done %s182, 128
        $region32: #{tpu_custom_call.1} parent=27 // pred_fallthru
          _
        %s191 = sand.u32 %s72, 1
        %s192 = scalar_lea.sflag [#allocation6], %s191
        %s193 = sand.u32 %s72, 1
        %s194 = smul.addr %s193, 8
        %s195 = scalar_lea.vmem [#allocation5], %s194
        // Predicated region
        $region33: #{tpu_custom_call.1} parent=27 // pred_check
          %p196 = pneg %p85
        $region34: #{tpu_custom_call.1} parent=27 // pred_check_branch
          %198 = sbr.rel (%p196) target = $region36
        $region35: #{tpu_custom_call.1} parent=27 // pred_region
          %200 = dma.done %s192, 128
        $region36: #{tpu_custom_call.1} parent=27 // pred_fallthru
          _
        %s201 = sand.u32 %s44, 1
        %s202 = scalar_lea.sflag [#allocation3], %s201
        %s203 = sand.u32 %s44, 1
        %s204 = smul.addr %s203, 8
        %s205 = scalar_lea.vmem [#allocation2], %s204
        %p206 = pneg %p57
        %p207 = pneg %p54
        %s208 = sand.u32 %s72, 1
        %s209 = scalar_lea.sflag [#allocation6], %s208
        %s210 = sand.u32 %s72, 1
        %s211 = smul.addr %s210, 8
        %s212 = scalar_lea.vmem [#allocation5], %s211
        %p213 = pneg %p85
        %p214 = pneg %p82
        %p215 = pneg %p111
        %p216 = pneg %p108
        %s217 = sand.u32 %s98, 1
        %s218 = scalar_lea.sflag [#allocation4], %s217
        %s219 = sand.u32 %s98, 1
        %s220 = smul.addr %s219, 2
        %s221 = scalar_lea.vmem [#allocation7], %s220
        %s222 = smul.u32 2, %s27
        %s223 = smul.u32 2, %s27
        %p224 = scmp.eq.s32.totalorder %s27, 0
        // Predicated region
        $region37: #{tpu_custom_call.1} parent=27 // pred_check
          %p225 = pneg %p224
        $region38: #{tpu_custom_call.1} parent=27 // pred_check_branch
          %227 = sbr.rel (%p225) target = $region40
        $region39: #{tpu_custom_call.1} parent=27 // pred_region
          %v228 = vlaneseq
          %vm229 = vcmp.ge.s32.totalorder %v228, 0
          %vm230 = vcmp.lt.s32.totalorder %v228, 256
          %vm231 = vmand %vm229, %vm230
          %232 = vst.msk [vmem:[%s221] sm:$0x3] %vm231, 0.0
        $region40: #{tpu_custom_call.1} parent=27 // pred_fallthru
          _
        %v233 = vld [vmem:[%s185] sm:$0xff]
        %v234 = vld [vmem:[%s195] sm:$0xff]
        %236 = vst [vmem:[#allocation1] ss:$2 sm:$0xff] %v233
        %v237 = vld.sshfl [vmem:[#allocation1] sm:$0xff pattern:$0x75316420]
        %v238 = vld.sshfl [vmem:[#allocation1 + $0x8] sm:$0xff pattern:$0x75316420]
        %vm241 = vcmask 1043456
        %v242 = vsel %vm241, %v237, -inf
        %v243 = vrot.slane %v242, 4
        %v244 = vmax.f32 %v242, %v243
        %v245 = vrot.slane %v244, 2
        %v246 = vmax.f32 %v244, %v245
        %v247 = vrot.slane %v246, 1
        %v248 = vmax.f32 %v246, %v247
        %v249 = vsel %vm241, %v238, -inf
        %v250 = vrot.slane %v249, 4
        %v251 = vmax.f32 %v249, %v250
        %v252 = vrot.slane %v251, 2
        %v253 = vmax.f32 %v251, %v252
        %v254 = vrot.slane %v253, 1
        %v255 = vmax.f32 %v253, %v254
        %v258 = vrot.slane %v255, 4
        %v259 = vsel %vm241, %v248, %v258
        %v261 = vsub.f32 %v233, %v259
        %v262 = vmul.f32 %v261, 1.442695
        %v263 = vpow.pop %v262
        %265 = vst [vmem:[#allocation1] ss:$2 sm:$0xff] %v263
        %v266 = vld.sshfl [vmem:[#allocation1] sm:$0xff pattern:$0x75316420]
        %v267 = vld.sshfl [vmem:[#allocation1 + $0x8] sm:$0xff pattern:$0x75316420]
        %v270 = vsel %vm241, %v266, 0.0
        %v271 = vrot.slane %v270, 4
        %v272 = vadd.f32 %v270, %v271
        %v273 = vrot.slane %v272, 2
        %v274 = vadd.f32 %v272, %v273
        %v275 = vrot.slane %v274, 1
        %v276 = vadd.f32 %v274, %v275
        %v277 = vsel %vm241, %v267, 0.0
        %v278 = vrot.slane %v277, 4
        %v279 = vadd.f32 %v277, %v278
        %v280 = vrot.slane %v279, 2
        %v281 = vadd.f32 %v279, %v280
        %v282 = vrot.slane %v281, 1
        %v283 = vadd.f32 %v281, %v282
        %v284 = vlog2.pop %v276
        %v285 = vmul.f32 %v284, 0.6931472
        %v286 = vlog2.pop %v283
        %v287 = vmul.f32 %v286, 0.6931472
        %v288 = vadd.f32 %v285, %v248
        %v289 = vadd.f32 %v287, %v255
        %291 = vst [vmem:[#allocation1] ss:$2 sm:$0xff] %v234
        %v292 = vld.sshfl [vmem:[#allocation1] sm:$0xff pattern:$0x75316420]
        %v293 = vld.sshfl [vmem:[#allocation1 + $0x8] sm:$0xff pattern:$0x75316420]
        %v296 = vsel %vm241, %v292, 0.0
        %v297 = vrot.slane %v296, 4
        %v298 = vadd.f32 %v296, %v297
        %v299 = vrot.slane %v298, 2
        %v300 = vadd.f32 %v298, %v299
        %v301 = vrot.slane %v300, 1
        %v302 = vadd.f32 %v300, %v301
        %v303 = vsel %vm241, %v293, 0.0
        %v304 = vrot.slane %v303, 4
        %v305 = vadd.f32 %v303, %v304
        %v306 = vrot.slane %v305, 2
        %v307 = vadd.f32 %v305, %v306
        %v308 = vrot.slane %v307, 1
        %v309 = vadd.f32 %v307, %v308
        %v310 = vmul.f32 %v233, %v234
        %312 = vst [vmem:[#allocation1] ss:$2 sm:$0xff] %v310
        %v313 = vld.sshfl [vmem:[#allocation1] sm:$0xff pattern:$0x75316420]
        %v314 = vld.sshfl [vmem:[#allocation1 + $0x8] sm:$0xff pattern:$0x75316420]
        %v317 = vsel %vm241, %v313, 0.0
        %v318 = vrot.slane %v317, 4
        %v319 = vadd.f32 %v317, %v318
        %v320 = vrot.slane %v319, 2
        %v321 = vadd.f32 %v319, %v320
        %v322 = vrot.slane %v321, 1
        %v323 = vadd.f32 %v321, %v322
        %v324 = vsel %vm241, %v314, 0.0
        %v325 = vrot.slane %v324, 4
        %v326 = vadd.f32 %v324, %v325
        %v327 = vrot.slane %v326, 2
        %v328 = vadd.f32 %v326, %v327
        %v329 = vrot.slane %v328, 1
        %v330 = vadd.f32 %v328, %v329
        %v331 = vmul.f32 %v288, %v302
        %v332 = vmul.f32 %v289, %v309
        %v333 = vsub.f32 %v331, %v323
        %v334 = vsub.f32 %v332, %v330
        %v335 = vld [vmem:[%s221] sm:$0x3]
        %v338 = vrot.slane %v334, 7
        %vm339 = vcmask 1040384
        %v340 = vsel %vm339, %v333, %v338
        %v342 = vadd.f32 %v335, %v340
        %v343 = vlaneseq
        %vm344 = vcmp.ge.s32.totalorder %v343, 0
        %vm345 = vcmp.lt.s32.totalorder %v343, 256
        %vm346 = vmand %vm344, %vm345
        %347 = vst.msk [vmem:[%s221] sm:$0x3] %vm346, %v342
        %s348 = sand.u32 %s98, 1
        %s349 = scalar_lea.sflag [#allocation4], %s348
        %s350 = sand.u32 %s98, 1
        %s351 = smul.addr %s350, 2
        %s352 = scalar_lea.vmem [#allocation7], %s351
        // Predicated region
        $region41: #{tpu_custom_call.1} parent=27 // pred_check
          %p353 = pneg %p108
        $region42: #{tpu_custom_call.1} parent=27 // pred_check_branch
          %355 = sbr.rel (%p353) target = $region44
        $region43: #{tpu_custom_call.1} parent=27 // pred_region
          %357 = vsyncadd %s349, 0
          %s358 = smul.addr %s26, 2
          %s359 = scalar_lea.hbm %s2, %s358
          %s361 = sshll.u32 %s352, 4
          %s362 = int_to_ptr.vmem [resolvable:$true] %s361
          %s363 = sshll.u32 %s359, 4
          %s364 = int_to_ptr.hbm [resolvable:$true] %s363
          %366 = dma.vmem_to_hbm [thread:$0]  %s362, 32, %s364, %s349
        $region44: #{tpu_custom_call.1} parent=27 // pred_fallthru
          _
      $region28: #{tpu_custom_call.1} parent=5 // pred_fallthru
        _
      %p367 = scmp.le.s32.totalorder 2, %s17
      // Predicated region
      $region45: #{tpu_custom_call.1} parent=5 // pred_check
        %p368 = pneg %p367
      $region46: #{tpu_custom_call.1} parent=5 // pred_check_branch
        %370 = sbr.rel (%p368) target = $region48
      $region47: #{tpu_custom_call.1} parent=5 // pred_region
        %s371 = ssub.s32 %s17, 2
        // Predicated region
        $region49: #{tpu_custom_call.1} parent=47 // pred_check
          %p372 = pneg %p114
        $region50: #{tpu_custom_call.1} parent=47 // pred_check_branch
          %374 = sbr.rel (%p372) target = $region52
        $region51: #{tpu_custom_call.1} parent=47 // pred_region
          %s375 = sand.u32 %s99, 1
          %s376 = scalar_lea.sflag [#allocation4], %s375
          %s377 = sand.u32 %s99, 1
          %s378 = smul.addr %s377, 2
          %s379 = scalar_lea.vmem [#allocation7], %s378
          %381 = dma.done %s376, 32
        $region52: #{tpu_custom_call.1} parent=47 // pred_fallthru
          _
      $region48: #{tpu_custom_call.1} parent=5 // pred_fallthru
        _
    $region6: #{tpu_custom_call.1} parent=1 // loop_footer
      %s21 = sadd.s32 1, %s17
    $region7: #{tpu_custom_call.1} parent=1 // loop_footer_branch
      %16 = sbr.rel target = $region3
    $region8: #{tpu_custom_call.1} parent=1 // loop_exit
      _
    %382 = vsyncpa [#allocation3], 1
    %s383 = scalar_lea.sflag [#allocation3], 1
    %384 = vsyncpa %s383, 1
    %385 = vsyncpa [#allocation6], 1
    %s386 = scalar_lea.sflag [#allocation6], 1
    %387 = vsyncpa %s386, 1
    %388 = vsyncpa [#allocation4], 1
    %s389 = scalar_lea.sflag [#allocation4], 1
    %390 = vsyncpa %s389, 1

</llo_original>
